<compile_context>
chip_gen: v7x
topology: tpu7x:2x2x1
jax: 0.10.0
libtpu: 0.0.40
codegen_flags: <defaults>
</compile_context>

<pallas_src>
import functools

import jax
import jax.numpy as jnp
from jax.experimental import pallas as pl
from jax.experimental.pallas import tpu as pltpu

# ---------------- configuration (small BERT config) ----------------------------
VOCAB_SIZE = 128          # config.vocab_size
MAX_POS = 64              # config.max_position_embeddings
TYPE_VOCAB = 2            # config.type_vocab_size
HIDDEN = 32               # config.hidden_size
LN_EPS = 1e-12
TOKEN_TILE = 512          # token tile used when N is large (v7x dual-TC sharding)


# ------------------------------ Pallas kernel ----------------------------------
def _bert_embeddings_kernel(ids_ref, tok_ref, table_ref, gamma_ref, beta_ref,
                            o_ref, *, vocab_size, max_pos, seq_len, tile_rows):
    """Fused (word + pos + type) lookup -> sum -> LayerNorm for one token tile.

    ids_ref / tok_ref : (tile, 1) int32   word-id / token-type-id per token
    table_ref         : (K_pad, H) f32    row-concatenated [word; pos; type] table
                                          (zero rows pad K_pad to a multiple of 256)
    gamma_ref/beta_ref: (1, H)    f32     LayerNorm affine
    o_ref             : (tile, H) f32
    """
    n = ids_ref.shape[0]
    k = table_ref.shape[0]

    # Position ids are derived in-kernel: flattened row index (global across the
    # token grid) modulo the sequence length.  No pos-id input DMA needed.
    row0 = pl.program_id(0) * tile_rows
    rows = row0 + jax.lax.broadcasted_iota(jnp.int32, (n, 1), 0)
    pos = rows % seq_len

    # One multi-hot matrix with three 1s per row (word id, offset pos id,
    # offset token-type id).  A single MXU matmul against the concatenated
    # table yields word_emb + pos_emb + type_emb directly.  Padded table rows
    # (>= vocab+pos+type) can never match a lane target, so they add nothing.
    lanes = jax.lax.broadcasted_iota(jnp.int32, (n, k), 1)
    hot = ((lanes == ids_ref[...])
           | (lanes == pos + vocab_size)
           | (lanes == tok_ref[...] + (vocab_size + max_pos)))
    multihot = hot.astype(table_ref.dtype)   # exact 0/1 in f32 or bf16

    x = jnp.dot(multihot, table_ref[...], preferred_element_type=jnp.float32)

    # LayerNorm in f32 (eps inside sqrt, biased variance -- matches torch LN).
    mean = jnp.mean(x, axis=-1, keepdims=True)
    var = jnp.mean((x - mean) ** 2, axis=-1, keepdims=True)
    y = (x - mean) * jax.lax.rsqrt(var + LN_EPS)
    o_ref[...] = (y * gamma_ref[...] + beta_ref[...]).astype(o_ref.dtype)
    # dropout == identity at inference


# ------------------------------ wrapper -----------------------------------------
def bert_embeddings(params, input_ids, token_type_ids=None):
    """input_ids: (B, S) int32 -> (B, S, HIDDEN) f32."""
    B, S = input_ids.shape
    if token_type_ids is None:
        token_type_ids = jnp.zeros_like(input_ids)

    n = B * S
    ids = input_ids.reshape(n, 1).astype(jnp.int32)
    tok = token_type_ids.reshape(n, 1).astype(jnp.int32)

    table = params["table"]                    # pre-concatenated & padded at init
    vocab_size = params["word_emb"].shape[0]
    max_pos = params["pos_emb"].shape[0]

    # Token-tiled grid: large N shards across TensorCores (v7x); small N runs
    # as a single full-size tile (grid=(1,)) with zero extra per-step overhead.
    if n > TOKEN_TILE and n % TOKEN_TILE == 0:
        tile = TOKEN_TILE
    else:
        tile = n
    grid = (n // tile,)

    kernel = functools.partial(
        _bert_embeddings_kernel,
        vocab_size=vocab_size, max_pos=max_pos, seq_len=S, tile_rows=tile)

    out = pl.pallas_call(
        kernel,
        out_shape=jax.ShapeDtypeStruct((n, HIDDEN), jnp.float32),
        grid_spec=pltpu.PrefetchScalarGridSpec(
            num_scalar_prefetch=0,
            grid=grid,
            in_specs=[
                pl.BlockSpec((tile, 1), lambda i: (i, 0)),            # ids
                pl.BlockSpec((tile, 1), lambda i: (i, 0)),            # token types
                pl.BlockSpec(table.shape, lambda i: (0, 0)),          # table (resident)
                pl.BlockSpec((1, HIDDEN), lambda i: (0, 0)),          # gamma
                pl.BlockSpec((1, HIDDEN), lambda i: (0, 0)),          # beta
            ],
            out_specs=pl.BlockSpec((tile, HIDDEN), lambda i: (i, 0)),
        ),
        compiler_params=pltpu.CompilerParams(
            dimension_semantics=("parallel",)),
    )(ids, tok, table, params["gamma"], params["beta"])

    return out.reshape(B, S, HIDDEN)


# ------------------------------ reference (pure JAX) ----------------------------
def bert_embeddings_ref(params, input_ids, token_type_ids=None):
    B, S = input_ids.shape
    if token_type_ids is None:
        token_type_ids = jnp.zeros_like(input_ids)
    position_ids = jnp.broadcast_to(jnp.arange(S, dtype=jnp.int32)[None, :], (B, S))
    w = jnp.take(params["word_emb"], input_ids, axis=0)
    p = jnp.take(params["pos_emb"], position_ids, axis=0)
    t = jnp.take(params["type_emb"], token_type_ids, axis=0)
    x = w + p + t
    mean = jnp.mean(x, axis=-1, keepdims=True)
    var = jnp.mean((x - mean) ** 2, axis=-1, keepdims=True)
    y = (x - mean) / jnp.sqrt(var + LN_EPS)
    return y * params["gamma"][0] + params["beta"][0]


# ------------------------------ deterministic init ------------------------------
def init_params(key):
    k1, k2, k3 = jax.random.split(key, 3)

    def emb(k, rows):
        w = jax.random.normal(k, (rows, HIDDEN), jnp.float32) * 0.02
        return w.at[0].set(0.0)     # padding_idx=0 row zeroed (as in nn.Embedding)

    word = emb(k1, VOCAB_SIZE)
    pos = emb(k2, MAX_POS)
    typ = emb(k3, TYPE_VOCAB)

    # Hoisted out of the forward path: concatenate the three tables once and
    # zero-pad the row count K up to a multiple of 256 (clean MXU K-dim).
    k_total = VOCAB_SIZE + MAX_POS + TYPE_VOCAB
    k_pad = ((k_total + 255) // 256) * 256
    table = jnp.concatenate([word, pos, typ], axis=0)
    table = jnp.pad(table, ((0, k_pad - k_total), (0, 0)))

    return {
        "word_emb": word,
        "pos_emb": pos,
        "type_emb": typ,
        "table": table,                                # (K_pad, H), K_pad = 256
        "gamma": jnp.ones((1, HIDDEN), jnp.float32),
        "beta": jnp.zeros((1, HIDDEN), jnp.float32),
    }


# ------------------------------ main ---------------------------------------------
if __name__ == "__main__":
    key = jax.random.PRNGKey(0)
    kp, ki, kt = jax.random.split(key, 3)
    params = init_params(kp)

    B, S = 2, 8
    input_ids = jax.random.randint(ki, (B, S), 0, VOCAB_SIZE, dtype=jnp.int32)
    token_type_ids = jax.random.randint(kt, (B, S), 0, TYPE_VOCAB, dtype=jnp.int32)

    out = jax.jit(bert_embeddings)(params, input_ids, token_type_ids)
    jax.block_until_ready(out)

    ref = bert_embeddings_ref(params, input_ids, token_type_ids)

    assert out.shape == (B, S, HIDDEN)
    assert jnp.all(jnp.isfinite(out))
    assert jnp.allclose(out, ref, atol=1e-5, rtol=1e-5)
    print("KERNEL_OK")
</pallas_src>

<mosaic_0001>
module attributes {stable_mosaic.version = 11 : i64} {
  func.func @_bert_embeddings_kernel(%arg0: i32, %arg1: memref<16x1xi32, #tpu.memory_space<vmem>>, %arg2: memref<16x1xi32, #tpu.memory_space<vmem>>, %arg3: memref<256x32xf32, #tpu.memory_space<vmem>>, %arg4: memref<1x32xf32, #tpu.memory_space<vmem>>, %arg5: memref<1x32xf32, #tpu.memory_space<vmem>>, %arg6: memref<16x32xf32, #tpu.memory_space<vmem>>) attributes {dimension_semantics = [#tpu.dimension_semantics<parallel>], iteration_bounds = array<i64: 1>, scalar_prefetch = 0 : i64, scratch_operands = 0 : i64, tpu.core_type = #tpu.core_type<tc>, window_params = [{transform_indices = @transform_0, window_bounds = array<i64: 16, 1>}, {transform_indices = @transform_1, window_bounds = array<i64: 16, 1>}, {pipeline_mode = #tpu.pipeline_mode<synchronous>, transform_indices = @transform_2, window_bounds = array<i64: 256, 32>}, {pipeline_mode = #tpu.pipeline_mode<synchronous>, transform_indices = @transform_3, window_bounds = array<i64: 1, 32>}, {pipeline_mode = #tpu.pipeline_mode<synchronous>, transform_indices = @transform_4, window_bounds = array<i64: 1, 32>}, {transform_indices = @transform_5, window_bounds = array<i64: 16, 32>}]} {
    %c16_i32 = arith.constant 16 : i32
    %0 = arith.muli %arg0, %c16_i32 : i32
    %1 = tpu.iota {dimensions = array<i32: 0>} : vector<16x1xi32>
    %2 = vector.broadcast %0 : i32 to vector<16x1xi32>
    %3 = arith.addi %2, %1 : vector<16x1xi32>
    %c8_i32 = arith.constant 8 : i32
    %c0_i32 = arith.constant 0 : i32
    %4 = arith.cmpi eq, %c8_i32, %c0_i32 : i32
    %c1_i32 = arith.constant 1 : i32
    %5 = arith.select %4, %c1_i32, %c8_i32 : i32
    %6 = vector.broadcast %5 : i32 to vector<16x1xi32>
    %7 = arith.remsi %3, %6 : vector<16x1xi32>
    %c0_i32_0 = arith.constant 0 : i32
    %8 = vector.broadcast %c0_i32_0 : i32 to vector<16x1xi32>
    %9 = arith.cmpi ne, %7, %8 : vector<16x1xi32>
    %c0_i32_1 = arith.constant 0 : i32
    %10 = vector.broadcast %c0_i32_1 : i32 to vector<16x1xi32>
    %11 = arith.cmpi slt, %7, %10 : vector<16x1xi32>
    %c0_i32_2 = arith.constant 0 : i32
    %12 = arith.cmpi slt, %5, %c0_i32_2 : i32
    %13 = vector.broadcast %12 : i1 to vector<16x1xi1>
    %14 = vector.broadcast %13 : vector<16x1xi1> to vector<16x1xi1>
    %15 = arith.xori %11, %14 : vector<16x1xi1>
    %16 = arith.andi %15, %9 : vector<16x1xi1>
    %17 = vector.broadcast %5 : i32 to vector<16x1xi32>
    %18 = arith.addi %7, %17 : vector<16x1xi32>
    %19 = arith.select %16, %18, %7 : vector<16x1xi1>, vector<16x1xi32>
    %20 = tpu.iota {dimensions = array<i32: 1>} : vector<16x256xi32>
    %c0 = arith.constant 0 : index
    %c0_3 = arith.constant 0 : index
    %21 = vector.load %arg1[%c0, %c0_3] : memref<16x1xi32, #tpu.memory_space<vmem>>, vector<16x1xi32>
    %22 = vector.broadcast %21 : vector<16x1xi32> to vector<16x256xi32>
    %23 = arith.cmpi eq, %20, %22 : vector<16x256xi32>
    %c128_i32 = arith.constant 128 : i32
    %24 = vector.broadcast %c128_i32 : i32 to vector<16x1xi32>
    %25 = arith.addi %19, %24 : vector<16x1xi32>
    %26 = vector.broadcast %25 : vector<16x1xi32> to vector<16x256xi32>
    %27 = arith.cmpi eq, %20, %26 : vector<16x256xi32>
    %28 = arith.ori %23, %27 : vector<16x256xi1>
    %c0_4 = arith.constant 0 : index
    %c0_5 = arith.constant 0 : index
    %29 = vector.load %arg2[%c0_4, %c0_5] : memref<16x1xi32, #tpu.memory_space<vmem>>, vector<16x1xi32>
    %c192_i32 = arith.constant 192 : i32
    %30 = vector.broadcast %c192_i32 : i32 to vector<16x1xi32>
    %31 = arith.addi %29, %30 : vector<16x1xi32>
    %32 = vector.broadcast %31 : vector<16x1xi32> to vector<16x256xi32>
    %33 = arith.cmpi eq, %20, %32 : vector<16x256xi32>
    %34 = arith.ori %28, %33 : vector<16x256xi1>
    %35 = arith.extui %34 : vector<16x256xi1> to vector<16x256xi32>
    %36 = arith.sitofp %35 : vector<16x256xi32> to vector<16x256xf32>
    %c0_6 = arith.constant 0 : index
    %c0_7 = arith.constant 0 : index
    %37 = vector.load %arg3[%c0_6, %c0_7] : memref<256x32xf32, #tpu.memory_space<vmem>>, vector<256x32xf32>
    %cst = arith.constant dense<0.000000e+00> : vector<16x32xf32>
    %38 = tpu.matmul %36, %37, %cst {dimension_numbers = #tpu.dot_dimension_numbers<[1], [0], [0], [1], [0, 0, 1, 1], [], []>} : vector<16x256xf32>, vector<256x32xf32>, vector<16x32xf32> -> vector<16x32xf32>
    %cst_8 = arith.constant dense<0.000000e+00> : vector<16xf32>
    %39 = vector.multi_reduction <add>, %38, %cst_8 [1] : vector<16x32xf32> to vector<16xf32>
    %40 = vector.shape_cast %39 : vector<16xf32> to vector<16x1xf32>
    %cst_9 = arith.constant 3.200000e+01 : f32
    %41 = vector.broadcast %cst_9 : f32 to vector<16x1xf32>
    %42 = arith.divf %40, %41 : vector<16x1xf32>
    %43 = vector.broadcast %42 : vector<16x1xf32> to vector<16x32xf32>
    %44 = arith.subf %38, %43 : vector<16x32xf32>
    %45 = arith.mulf %44, %44 : vector<16x32xf32>
    %cst_10 = arith.constant dense<0.000000e+00> : vector<16xf32>
    %46 = vector.multi_reduction <add>, %45, %cst_10 [1] : vector<16x32xf32> to vector<16xf32>
    %47 = vector.shape_cast %46 : vector<16xf32> to vector<16x1xf32>
    %cst_11 = arith.constant 3.200000e+01 : f32
    %48 = vector.broadcast %cst_11 : f32 to vector<16x1xf32>
    %49 = arith.divf %47, %48 : vector<16x1xf32>
    %50 = vector.broadcast %42 : vector<16x1xf32> to vector<16x32xf32>
    %51 = arith.subf %38, %50 : vector<16x32xf32>
    %cst_12 = arith.constant 9.99999996E-13 : f32
    %52 = vector.broadcast %cst_12 : f32 to vector<16x1xf32>
    %53 = arith.addf %49, %52 : vector<16x1xf32>
    %54 = math.rsqrt %53 : vector<16x1xf32>
    %55 = vector.broadcast %54 : vector<16x1xf32> to vector<16x32xf32>
    %56 = arith.mulf %51, %55 : vector<16x32xf32>
    %c0_13 = arith.constant 0 : index
    %c0_14 = arith.constant 0 : index
    %57 = vector.load %arg4[%c0_13, %c0_14] : memref<1x32xf32, #tpu.memory_space<vmem>>, vector<1x32xf32>
    %58 = vector.broadcast %57 : vector<1x32xf32> to vector<16x32xf32>
    %59 = arith.mulf %56, %58 : vector<16x32xf32>
    %c0_15 = arith.constant 0 : index
    %c0_16 = arith.constant 0 : index
    %60 = vector.load %arg5[%c0_15, %c0_16] : memref<1x32xf32, #tpu.memory_space<vmem>>, vector<1x32xf32>
    %61 = vector.broadcast %60 : vector<1x32xf32> to vector<16x32xf32>
    %62 = arith.addf %59, %61 : vector<16x32xf32>
    %c0_17 = arith.constant 0 : index
    %c0_18 = arith.constant 0 : index
    %63 = vector.load %arg6[%c0_17, %c0_18] : memref<16x32xf32, #tpu.memory_space<vmem>>, vector<16x32xf32>
    tpu.vector_store %arg6[%c0_17, %c0_18], %62 {strides = array<i32>} : memref<16x32xf32, #tpu.memory_space<vmem>>, vector<16x32xf32>,
    return
  }
  func.func @transform_0(%arg0: i32) -> (i32, i32) {
    %c0_i32 = arith.constant 0 : i32
    %c0_i32_0 = arith.constant 0 : i32
    return %arg0, %c0_i32 : i32, i32
  }
  func.func @transform_1(%arg0: i32) -> (i32, i32) {
    %c0_i32 = arith.constant 0 : i32
    %c0_i32_0 = arith.constant 0 : i32
    return %arg0, %c0_i32 : i32, i32
  }
  func.func @transform_2(%arg0: i32) -> (i32, i32) {
    %c0_i32 = arith.constant 0 : i32
    %c0_i32_0 = arith.constant 0 : i32
    %c0_i32_1 = arith.constant 0 : i32
    return %c0_i32, %c0_i32_0 : i32, i32
  }
  func.func @transform_3(%arg0: i32) -> (i32, i32) {
    %c0_i32 = arith.constant 0 : i32
    %c0_i32_0 = arith.constant 0 : i32
    %c0_i32_1 = arith.constant 0 : i32
    return %c0_i32, %c0_i32_0 : i32, i32
  }
  func.func @transform_4(%arg0: i32) -> (i32, i32) {
    %c0_i32 = arith.constant 0 : i32
    %c0_i32_0 = arith.constant 0 : i32
    %c0_i32_1 = arith.constant 0 : i32
    return %c0_i32, %c0_i32_0 : i32, i32
  }
  func.func @transform_5(%arg0: i32) -> (i32, i32) {
    %c0_i32 = arith.constant 0 : i32
    %c0_i32_0 = arith.constant 0 : i32
    return %arg0, %c0_i32 : i32, i32
  }
}

</mosaic_0001>

<llo_original>
// kernel: bert_embeddings.1
$region0: #{bert_embeddings.1}
  #allocation0 [shape = 'u32[]', space=smem, size = 0x4, offset = 0x4, fixed_abs, tag = 'smem constant byte address 0x4 - core index']
  #allocation1 [shape = 'u32[144,128]{1,0:T(1,128)}', space=vmem, size = 0x12000, scoped, tag = 'internal scratch']
  %s0 = inlined_call_operand.vmem [shape: s32[16,1], index: 0, kind: input, shape index: {}]
  %s1 = inlined_call_operand.vmem [shape: s32[16,1], index: 1, kind: input, shape index: {}]
  %s2 = inlined_call_operand.vmem [shape: f32[256,32], index: 2, kind: input, shape index: {}]
  %s3 = inlined_call_operand.vmem [shape: f32[1,32], index: 3, kind: input, shape index: {}]
  %s4 = inlined_call_operand.vmem [shape: f32[1,32], index: 4, kind: input, shape index: {}]
  %s5 = inlined_call_operand.hbm [shape: f32[16,32], index: 5, kind: output, shape index: {}]
  %s6 = sld [smem:[#allocation0]]
  $region30: #{bert_embeddings.1} parent=0
    _
  %s8 = ssub.s32 1, %s6
  %s9 = scalar_select 0, %s8, %s6
  $region1: #{bert_embeddings.1} parent=0
    #allocation2 [shape = 'u8[8192]{0}', space=vmem, size = 0x2000, scoped, tag = 'output window, operand 0, single buffered']
    #allocation3 [shape = 's32[1]{0}', space=sflag, size = 0x4, scoped, tag = 'scoped memory for bert_embeddings.1']
    %10 = vsyncpa [#allocation3], 0
    // Predicated region
    $region2: #{bert_embeddings.1} parent=1 // pred_check
      _
    $region3: #{bert_embeddings.1} parent=1 // pred_check_branch
      %12 = sbr.rel (0) target = $region5
    $region4: #{bert_embeddings.1} parent=1 // pred_region
      _
    $region5: #{bert_embeddings.1} parent=1 // pred_fallthru
      _
    // Predicated region
    $region6: #{bert_embeddings.1} parent=1 // pred_check
      _
    $region7: #{bert_embeddings.1} parent=1 // pred_check_branch
      %14 = sbr.rel (0) target = $region9
    $region8: #{bert_embeddings.1} parent=1 // pred_region
      _
    $region9: #{bert_embeddings.1} parent=1 // pred_fallthru
      _
    // Predicated region
    $region10: #{bert_embeddings.1} parent=1 // pred_check
      _
    $region11: #{bert_embeddings.1} parent=1 // pred_check_branch
      %16 = sbr.rel (0) target = $region13
    $region12: #{bert_embeddings.1} parent=1 // pred_region
      _
    $region13: #{bert_embeddings.1} parent=1 // pred_fallthru
      _
    // Predicated region
    $region14: #{bert_embeddings.1} parent=1 // pred_check
      _
    $region15: #{bert_embeddings.1} parent=1 // pred_check_branch
      %18 = sbr.rel (0) target = $region17
    $region16: #{bert_embeddings.1} parent=1 // pred_region
      _
    $region17: #{bert_embeddings.1} parent=1 // pred_fallthru
      _
    // Predicated region
    $region18: #{bert_embeddings.1} parent=1 // pred_check
      _
    $region19: #{bert_embeddings.1} parent=1 // pred_check_branch
      %20 = sbr.rel (0) target = $region21
    $region20: #{bert_embeddings.1} parent=1 // pred_region
      _
    $region21: #{bert_embeddings.1} parent=1 // pred_fallthru
      _
    %s21 = smul.u32 0, 16
    %v22 = vlaneseq
    %v23 = vshrl.u32 %v22, 7
    %v24 = vadd.s32 %v23, 8
    %v25 = vstv %s21
    %v26 = vadd.s32 %v25, %v23
    %v27 = vadd.s32 %v25, %v24
    %vm28 = vcmp.lt.s32.totalorder %v26, 0
    %v29 = vsub.s32 0, %v26
    %v30 = vsel %vm28, %v29, %v26
    %v31 = vshrl.u32 %v30, 3
    %v32 = vand.u32 %v30, 7
    %v33 = vsub.s32 0, %v32
    %v34 = vsel %vm28, %v33, %v32
    %vm35 = vcmp.lt.s32.totalorder %v27, 0
    %v36 = vsub.s32 0, %v27
    %v37 = vsel %vm35, %v36, %v27
    %v38 = vshrl.u32 %v37, 3
    %v39 = vand.u32 %v37, 7
    %v40 = vsub.s32 0, %v39
    %v41 = vsel %vm35, %v40, %v39
    %vm42 = vcmp.ne.s32.totalorder %v34, 0
    %vm43 = vcmp.ne.s32.totalorder %v41, 0
    %vm44 = vcmp.lt.s32.totalorder %v34, 0
    %vm45 = vcmp.lt.s32.totalorder %v41, 0
    %vm46 = vmand %vm44, %vm42
    %vm47 = vmand %vm45, %vm43
    %v48 = vadd.s32 %v34, 8
    %v49 = vadd.s32 %v41, 8
    %v50 = vsel %vm46, %v48, %v34
    %v51 = vsel %vm47, %v49, %v41
    %v52 = vlaneseq
    %v53 = vand.u32 %v52, 127
    %v54 = vadd.s32 %v53, 128
    %v55 = vld [vmem:[%s0] sm:$0xff]
    %v56 = vld [vmem:[%s0 + $0x8] sm:$0xff]
    %57 = vset.pattern.permute.xlu0 0
    %58 = vperm.xlu0 %57, %v55
    %v59 = vpop.permute.xlu0 %58
    %60 = vset.pattern.permute.xlu0 0
    %61 = vperm.xlu0 %60, %v56
    %v62 = vpop.permute.xlu0 %61
    %vm63 = vcmp.eq.s32.totalorder %v53, %v59
    %vm64 = vcmp.eq.s32.totalorder %v54, %v59
    %vm65 = vcmp.eq.s32.totalorder %v53, %v62
    %vm66 = vcmp.eq.s32.totalorder %v54, %v62
    %v67 = vadd.s32 %v50, 128
    %v68 = vadd.s32 %v51, 128
    %vm69 = vcmp.eq.s32.totalorder %v53, %v67
    %vm70 = vcmp.eq.s32.totalorder %v54, %v67
    %vm71 = vcmp.eq.s32.totalorder %v53, %v68
    %vm72 = vcmp.eq.s32.totalorder %v54, %v68
    %vm73 = vmor %vm63, %vm69
    %vm74 = vmor %vm64, %vm70
    %vm75 = vmor %vm65, %vm71
    %vm76 = vmor %vm66, %vm72
    %v77 = vld [vmem:[%s1] sm:$0xff]
    %v78 = vld [vmem:[%s1 + $0x8] sm:$0xff]
    %v79 = vadd.s32 %v77, 192
    %v80 = vadd.s32 %v78, 192
    %81 = vset.pattern.permute.xlu0 0
    %82 = vperm.xlu0 %81, %v79
    %v83 = vpop.permute.xlu0 %82
    %84 = vset.pattern.permute.xlu0 0
    %85 = vperm.xlu0 %84, %v80
    %v86 = vpop.permute.xlu0 %85
    %vm87 = vcmp.eq.s32.totalorder %v53, %v83
    %vm88 = vcmp.eq.s32.totalorder %v54, %v83
    %vm89 = vcmp.eq.s32.totalorder %v53, %v86
    %vm90 = vcmp.eq.s32.totalorder %v54, %v86
    %vm91 = vmor %vm73, %vm87
    %vm92 = vmor %vm74, %vm88
    %vm93 = vmor %vm75, %vm89
    %vm94 = vmor %vm76, %vm90
    %v95 = vsel %vm91, 1, 0
    %v96 = vsel %vm92, 1, 0
    %v97 = vsel %vm93, 1, 0
    %v98 = vsel %vm94, 1, 0
    %v99 = vcvt.s32.f32 %v95
    %v100 = vcvt.s32.f32 %v96
    %v101 = vcvt.s32.f32 %v97
    %v102 = vcvt.s32.f32 %v98
    %v103 = vld [vmem:[%s2] sm:$0xff]
    %v104 = vld [vmem:[%s2 + $0x8] sm:$0xff]
    %v105 = vld [vmem:[%s2 + $0x10] sm:$0xff]
    %v106 = vld [vmem:[%s2 + $0x18] sm:$0xff]
    %v107 = vld [vmem:[%s2 + $0x20] sm:$0xff]
    %v108 = vld [vmem:[%s2 + $0x28] sm:$0xff]
    %v109 = vld [vmem:[%s2 + $0x30] sm:$0xff]
    %v110 = vld [vmem:[%s2 + $0x38] sm:$0xff]
    %v111 = vld [vmem:[%s2 + $0x40] sm:$0xff]
    %v112 = vld [vmem:[%s2 + $0x48] sm:$0xff]
    %v113 = vld [vmem:[%s2 + $0x50] sm:$0xff]
    %v114 = vld [vmem:[%s2 + $0x58] sm:$0xff]
    %v115 = vld [vmem:[%s2 + $0x60] sm:$0xff]
    %v116 = vld [vmem:[%s2 + $0x68] sm:$0xff]
    %v117 = vld [vmem:[%s2 + $0x70] sm:$0xff]
    %v118 = vld [vmem:[%s2 + $0x78] sm:$0xff]
    %v119 = vld [vmem:[%s2 + $0x80] sm:$0xff]
    %v120 = vld [vmem:[%s2 + $0x88] sm:$0xff]
    %v121 = vld [vmem:[%s2 + $0x90] sm:$0xff]
    %v122 = vld [vmem:[%s2 + $0x98] sm:$0xff]
    %v123 = vld [vmem:[%s2 + $0xa0] sm:$0xff]
    %v124 = vld [vmem:[%s2 + $0xa8] sm:$0xff]
    %v125 = vld [vmem:[%s2 + $0xb0] sm:$0xff]
    %v126 = vld [vmem:[%s2 + $0xb8] sm:$0xff]
    %v127 = vld [vmem:[%s2 + $0xc0] sm:$0xff]
    %v128 = vld [vmem:[%s2 + $0xc8] sm:$0xff]
    %v129 = vld [vmem:[%s2 + $0xd0] sm:$0xff]
    %v130 = vld [vmem:[%s2 + $0xd8] sm:$0xff]
    %v131 = vld [vmem:[%s2 + $0xe0] sm:$0xff]
    %v132 = vld [vmem:[%s2 + $0xe8] sm:$0xff]
    %v133 = vld [vmem:[%s2 + $0xf0] sm:$0xff]
    %v134 = vld [vmem:[%s2 + $0xf8] sm:$0xff]
    %135 = vmatprep.subr.mxu0 0.0
    %136 = vmatpush1.msra.mxu0 %v103
    %137 = vmatprep.subr.mxu0 0.0
    %138 = vmatpush1.msra.mxu0 %v104
    %139 = vmatprep.subr.mxu0 0.0
    %140 = vmatpush1.msra.mxu0 %v105
    %141 = vmatprep.subr.mxu0 0.0
    %142 = vmatpush1.msra.mxu0 %v106
    %143 = vmatprep.subr.mxu0 0.0
    %144 = vmatpush1.msra.mxu0 %v107
    %145 = vmatprep.subr.mxu0 0.0
    %146 = vmatpush1.msra.mxu0 %v108
    %147 = vmatprep.subr.mxu0 0.0
    %148 = vmatpush1.msra.mxu0 %v109
    %149 = vmatprep.subr.mxu0 0.0
    %150 = vmatpush1.msra.mxu0 %v110
    %151 = vmatprep.subr.mxu0 0.0
    %152 = vmatpush1.msra.mxu0 %v111
    %153 = vmatprep.subr.mxu0 0.0
    %154 = vmatpush1.msra.mxu0 %v112
    %155 = vmatprep.subr.mxu0 0.0
    %156 = vmatpush1.msra.mxu0 %v113
    %157 = vmatprep.subr.mxu0 0.0
    %158 = vmatpush1.msra.mxu0 %v114
    %159 = vmatprep.subr.mxu0 0.0
    %160 = vmatpush1.msra.mxu0 %v115
    %161 = vmatprep.subr.mxu0 0.0
    %162 = vmatpush1.msra.mxu0 %v116
    %163 = vmatprep.subr.mxu0 0.0
    %164 = vmatpush1.msra.mxu0 %v117
    %165 = vmatprep.subr.mxu0 0.0
    %166 = vmatpush1.msra.mxu0 %v118
    %167 = vmatprep.subr.mxu0 0.0
    %168 = vmatpush1.msra.mxu0 %v119
    %169 = vmatprep.subr.mxu0 0.0
    %170 = vmatpush1.msra.mxu0 %v120
    %171 = vmatprep.subr.mxu0 0.0
    %172 = vmatpush1.msra.mxu0 %v121
    %173 = vmatprep.subr.mxu0 0.0
    %174 = vmatpush1.msra.mxu0 %v122
    %175 = vmatprep.subr.mxu0 0.0
    %176 = vmatpush1.msra.mxu0 %v123
    %177 = vmatprep.subr.mxu0 0.0
    %178 = vmatpush1.msra.mxu0 %v124
    %179 = vmatprep.subr.mxu0 0.0
    %180 = vmatpush1.msra.mxu0 %v125
    %181 = vmatprep.subr.mxu0 0.0
    %182 = vmatpush1.msra.mxu0 %v126
    %183 = vmatprep.subr.mxu0 0.0
    %184 = vmatpush1.msra.mxu0 %v127
    %185 = vmatprep.subr.mxu0 0.0
    %186 = vmatpush1.msra.mxu0 %v128
    %187 = vmatprep.subr.mxu0 0.0
    %188 = vmatpush1.msra.mxu0 %v129
    %189 = vmatprep.subr.mxu0 0.0
    %190 = vmatpush1.msra.mxu0 %v130
    %191 = vmatprep.subr.mxu0 0.0
    %192 = vmatpush1.msra.mxu0 %v131
    %193 = vmatprep.subr.mxu0 0.0
    %194 = vmatpush1.msra.mxu0 %v132
    %195 = vmatprep.subr.mxu0 0.0
    %196 = vmatpush1.msra.mxu0 %v133
    %197 = vmatprep.subr.mxu0 0.0
    %198 = vmatpush1.msra.mxu0 %v134
    %199 = vmatprep.mubr.f32.mxu0 %v100
    %200 = vmatmul.mubr.f32.gmra.mrb[0].mxu0 %v99
    %v201 = vpop.f32.mrb[0].mxu0
    %v202 = vadd.f32 0.0, %v201
    %v203 = vpop.f32.mrb[0].mxu0
    %204 = vmatprep.mubr.f32.mxu0 %v102
    %205 = vmatmul.mubr.f32.gmra.mrb[0].mxu0 %v101
    %v206 = vpop.f32.mrb[0].mxu0
    %v207 = vadd.f32 0.0, %v206
    %v208 = vpop.f32.mrb[0].mxu0
    %209 = vdwg.mxu0
    %vm210 = vcmask 261120
    %v211 = vsel %vm210, %v202, 0.0
    %212 = vadd.xlane.f32.xlu0 %v211
    %v213 = vpop.xlane.xlu0 %212
    %v214 = vsel %vm210, %v207, 0.0
    %215 = vadd.xlane.f32.xlu0 %v214
    %v216 = vpop.xlane.xlu0 %215
    %v217 = vrcp.pop 32.0
    %v218 = vmul.f32 %v213, %v217
    %v219 = vmul.f32 %v216, %v217
    %v220 = vsub.f32 %v202, %v218
    %v221 = vsub.f32 %v207, %v219
    %v222 = vmul.f32 %v220, %v220
    %v223 = vmul.f32 %v221, %v221
    %v224 = vsel %vm210, %v222, 0.0
    %225 = vadd.xlane.f32.xlu0 %v224
    %v226 = vpop.xlane.xlu0 %225
    %v227 = vsel %vm210, %v223, 0.0
    %228 = vadd.xlane.f32.xlu0 %v227
    %v229 = vpop.xlane.xlu0 %228
    %v230 = vmul.f32 %v226, %v217
    %v231 = vmul.f32 %v229, %v217
    %v232 = vadd.f32 %v230, 1e-12
    %v233 = vadd.f32 %v231, 1e-12
    %v234 = vrsqrt.pop %v232
    %v235 = vrsqrt.pop %v233
    %v236 = vmul.f32 %v220, %v234
    %v237 = vmul.f32 %v221, %v235
    %v238 = vld [vmem:[%s3] sm:$0x1]
    %v240 = vlaneseq
    %v241 = vshrl.u32 %v240, 7
    %v242 = vsub.s32 0, %v241
    %v243 = vrot.slane %v238, %v242
    %v245 = vmul.f32 %v236, %v243
    %v246 = vmul.f32 %v237, %v243
    %v247 = vld [vmem:[%s4] sm:$0x1]
    %v249 = vlaneseq
    %v250 = vshrl.u32 %v249, 7
    %v251 = vsub.s32 0, %v250
    %v252 = vrot.slane %v247, %v251
    %v254 = vadd.f32 %v245, %v252
    %v255 = vadd.f32 %v246, %v252
    %256 = vst.msk [vmem:[#allocation2] sm:$0xff] %vm210, %v254
    %257 = vst.msk [vmem:[#allocation2 + $0x8] sm:$0xff] %vm210, %v255
    // Predicated region
    $region22: #{bert_embeddings.1} parent=1 // pred_check
      _
    $region23: #{bert_embeddings.1} parent=1 // pred_check_branch
      %259 = sbr.rel (0) target = $region25
    $region24: #{bert_embeddings.1} parent=1 // pred_region
      %s261 = ssub.s32 256, 256
      %262 = vsyncadd [#allocation3], %s261
      %s263 = sshll.u32 [#allocation2], 4
      %s264 = int_to_ptr.vmem [resolvable:$true] %s263
      %269 = dma.vmem_to_hbm [thread:$0]  %s264, 256, %s5, [#allocation3], 128, 128, 8
    $region25: #{bert_embeddings.1} parent=1 // pred_fallthru
      _
    // Predicated region
    $region26: #{bert_embeddings.1} parent=1 // pred_check
      _
    $region27: #{bert_embeddings.1} parent=1 // pred_check_branch
      %271 = sbr.rel (0) target = $region29
    $region28: #{bert_embeddings.1} parent=1 // pred_region
      %272 = dma.done [#allocation3], 256
    $region29: #{bert_embeddings.1} parent=1 // pred_fallthru
      _
    %273 = vsyncpa [#allocation3], 1

</llo_original>
